<compile_context>
chip_gen: v5e
topology: v5e:2x2
jax: 0.10.0
libtpu: 0.0.40
codegen_flags: <defaults>
</compile_context>

<pallas_src>
import jax
import jax.numpy as jnp
from jax.experimental import pallas as pl
from jax.experimental.pallas import tpu as pltpu

TOKEN_SELF_ATTN_VALUE = -5e4   # same constant reformer_pytorch uses for self-mask


def _vmem_limit_bytes():
    """Generation-aware scoped-VMEM limit (96 MiB on 128 MiB parts, 48 MiB on v7x)."""
    cap = 64 * 1024 * 1024
    try:
        info = pltpu.get_tpu_info()
        c = getattr(info, "vmem_capacity_bytes", None)
        if c:
            cap = int(c)
    except Exception:
        pass
    if cap >= 128 * 1024 * 1024:
        return 96 * 1024 * 1024     # v5e / v6e: leave ~32 MiB headroom
    return 48 * 1024 * 1024         # v7x (64 MiB physical)


_VMEM_LIMIT = _vmem_limit_bytes()


def _pick_tile(dim, candidates):
    for c in candidates:
        if dim % c == 0:
            return c
    return dim


# ---------------------------------------------------------------------------
# Linear projection kernel (weight-resident, bf16 MXU, f32 accumulate)
# ---------------------------------------------------------------------------

def _linear_kernel(x_ref, w_ref, b_ref, o_ref):
    acc = jnp.dot(x_ref[...], w_ref[...], preferred_element_type=jnp.float32)
    o_ref[...] = (acc + b_ref[...]).astype(o_ref.dtype)


def linear_pallas(x2d, w, b=None, out_dtype=jnp.bfloat16):
    """y = x2d @ w (+ b).  Weight tile resident across the inner row loop."""
    M, K = x2d.shape
    N = w.shape[1]

    # lane-dense output: pad N to a multiple of 128 (unmasked vst), slice back.
    Np = ((N + 127) // 128) * 128
    if Np != N:
        w = jnp.pad(w, ((0, 0), (0, Np - N)))
        if b is not None:
            b = jnp.pad(b, ((0, Np - N),))
    # bf16 packs (16,128): keep the row tile a multiple of 16.
    Mp = ((M + 15) // 16) * 16
    if Mp != M:
        x2d = jnp.pad(x2d, ((0, Mp - M), (0, 0)))

    tm = _pick_tile(Mp, (512, 256, 128, 64, 32, 16))
    tn = _pick_tile(Np, (1024, 512, 256, 128))
    b2d = (jnp.zeros((1, Np), jnp.float32) if b is None
           else b.reshape(1, Np).astype(jnp.float32))

    out = pl.pallas_call(
        _linear_kernel,
        out_shape=jax.ShapeDtypeStruct((Mp, Np), out_dtype),
        # weight tile on the OUTER axis -> revisited (resident) across the
        # inner row loop, so it is DMA'd once per column tile instead of once
        # per (row, column) tile.
        grid=(Np // tn, Mp // tm),
        in_specs=[pl.BlockSpec((tm, K), lambda j, i: (i, 0)),
                  pl.BlockSpec((K, tn), lambda j, i: (0, j)),
                  pl.BlockSpec((1, tn), lambda j, i: (0, j))],
        out_specs=pl.BlockSpec((tm, tn), lambda j, i: (i, j)),
        compiler_params=pltpu.CompilerParams(
            dimension_semantics=("parallel", "arbitrary"),
            vmem_limit_bytes=_VMEM_LIMIT),
    )(x2d.astype(jnp.bfloat16), w.astype(jnp.bfloat16), b2d)

    if Mp != M:
        out = out[:M]
    if Np != N:
        out = out[:, :N]
    return out


# ---------------------------------------------------------------------------
# Bucketed LSH-attention kernel
# ---------------------------------------------------------------------------

def _chunk_attn_kernel(q_ref, k_ref, v_ref, kp_ref, vp_ref, qt_ref, pt_ref,
                       o_ref, lse_ref):
    q = q_ref[0]                 # (CT, cs, dh) bf16, pre-scaled by dh**-0.5
    k = k_ref[0]                 # (CT, cs, dh) bf16, l2-normalized
    v = v_ref[0]                 # (CT, cs, dh) bf16
    kp = kp_ref[0]               # look-one-back K (chunk c-1, wraparound)
    vp = vp_ref[0]
    qpos = qt_ref[0][:, 0, :]    # (CT, cs) int32 original token positions
    ppos = pt_ref[0][:, 0, :]    # (CT, cs) positions of the previous chunk

    ct, cs, dh = q.shape

    # Two matmuls (self chunk + look-back chunk) instead of concatenating K/V
    # inside VMEM: slices/concats are not views on TPU and would burn vld/vst
    # slots plus double the live K/V footprint.
    d_self = jnp.einsum('cqd,ckd->cqk', q, k,
                        preferred_element_type=jnp.float32)   # (CT, cs, cs)
    d_prev = jnp.einsum('cqd,ckd->cqk', q, kp,
                        preferred_element_type=jnp.float32)   # (CT, cs, cs)

    d_self = jnp.where(qpos[:, :, None] == qpos[:, None, :],
                       TOKEN_SELF_ATTN_VALUE, d_self)
    d_prev = jnp.where(qpos[:, :, None] == ppos[:, None, :],
                       TOKEN_SELF_ATTN_VALUE, d_prev)

    # shared max / denominator (single exp pass); reciprocal goes to the EUP.
    m = jnp.maximum(jnp.max(d_self, axis=-1, keepdims=True),
                    jnp.max(d_prev, axis=-1, keepdims=True))
    e_self = jnp.exp(d_self - m)
    e_prev = jnp.exp(d_prev - m)
    denom = (jnp.sum(e_self, axis=-1, keepdims=True)
             + jnp.sum(e_prev, axis=-1, keepdims=True))
    lse = m + jnp.log(denom)
    inv = pl.reciprocal(denom, approx=True)

    o = jnp.einsum('cqk,ckd->cqd', (e_self * inv).astype(v.dtype), v,
                   preferred_element_type=jnp.float32)
    o = o + jnp.einsum('cqk,ckd->cqd', (e_prev * inv).astype(vp.dtype), vp,
                       preferred_element_type=jnp.float32)

    o_ref[0] = o.astype(o_ref.dtype)
    lse_ref[0] = lse.reshape(ct, 1, cs)


def _pick_chunk_tile(nc, cs, dh, vmem_limit):
    # Per-chunk, per-grid-step VMEM footprint:
    #   double-buffered bf16 q/k/v/kprev/vprev blocks : 5 * 2 * cs*dh*2 = 20*cs*dh
    #   double-buffered bf16 o block                  : 2 * cs*dh*2     =  4*cs*dh
    #   f32 o accumulator inside the kernel           : cs*dh*4         =  4*cs*dh
    #   double-buffered int32 pos/pos_prev + f32 lse  : 16*cs + 8*cs    = 24*cs
    #   live f32 scores (d_self,d_prev,e_self,e_prev) + bf16 p casts    = 20*cs*cs
    per_chunk = 28 * cs * dh + 20 * cs * cs + 24 * cs
    budget = int(vmem_limit * 0.5)      # leave headroom for compiler scratch
    ct = 1
    for d in range(1, nc + 1):
        if nc % d == 0 and d * per_chunk <= budget:
            ct = d
    return ct


def chunk_attention_pallas(bq, bk, bv, bkp, bvp, positions, positions_prev):
    """Per-chunk LSH attention over hash-sorted buckets.

    bq/bk/bv:   (BH, NC, cs, dh) bf16 (bq pre-scaled, bk l2-normalized).
    bkp/bvp:    same, rolled by one chunk (look-one-back neighbours).
    positions / positions_prev: (BH, NC, 1, cs) int32 original token positions.
    """
    BH, NC, cs, dh = bq.shape
    CT = _pick_chunk_tile(NC, cs, dh, _VMEM_LIMIT)
    NT = NC // CT

    tile = pl.BlockSpec((1, CT, cs, dh), lambda b, t: (b, t, 0, 0))
    ptile = pl.BlockSpec((1, CT, 1, cs), lambda b, t: (b, t, 0, 0))

    # TODO(synk): on v5e, if a profile shows exposed DMA on the K/V streams,
    # pipeline_mode=pl.Buffered(3) on the k/v specs is the next knob (skip on
    # v7x where VMEM is 64 MiB).
    bo, lse = pl.pallas_call(
        _chunk_attn_kernel,
        out_shape=(jax.ShapeDtypeStruct((BH, NC, cs, dh), jnp.bfloat16),
                   jax.ShapeDtypeStruct((BH, NC, 1, cs), jnp.float32)),
        grid=(BH, NT),
        in_specs=[tile, tile, tile, tile, tile, ptile, ptile],
        out_specs=(tile, ptile),
        compiler_params=pltpu.CompilerParams(
            dimension_semantics=("parallel", "parallel"),
            vmem_limit_bytes=_VMEM_LIMIT),
    )(bq, bk, bv, bkp, bvp, positions, positions_prev)
    return bo, lse


# ---------------------------------------------------------------------------
# LSH attention glue (reformer_pytorch semantics, eval mode, non-causal)
# ---------------------------------------------------------------------------

def _l2_normalize(x, eps=1e-12):
    n = jnp.sqrt(jnp.sum(x * x, axis=-1, keepdims=True))
    return x / jnp.maximum(n, eps)


def lsh_attention(qk, v, *, bucket_size, n_hashes, rot_key):
    BH, seqlen, dh = qk.shape
    n_buckets = seqlen // bucket_size

    # TODO(synk): argmax hashing, the bucket argsort and the sort/unsort
    # gathers are data-dependent permutations with no clean Pallas equivalent;
    # they stay in plain JAX / XLA.
    rot = jax.random.normal(rot_key, (dh, n_hashes, n_buckets // 2), jnp.float32)
    rotated = jnp.einsum('btf,fhi->bhti', qk.astype(jnp.float32), rot)
    rotated = jnp.concatenate([rotated, -rotated], axis=-1)        # (BH, H, T, n_buckets)
    buckets = jnp.argmax(rotated, axis=-1).astype(jnp.int32)       # (BH, H, T)
    offsets = (jnp.arange(n_hashes, dtype=jnp.int32) * n_buckets).reshape(1, n_hashes, 1)
    buckets = (buckets + offsets).reshape(BH, n_hashes * seqlen)

    L = n_hashes * seqlen
    ticker = jnp.broadcast_to(jnp.arange(L, dtype=jnp.int32), (BH, L))
    buckets_and_t = seqlen * buckets + (ticker % seqlen)
    sticker = jnp.argsort(buckets_and_t, axis=-1).astype(jnp.int32)
    # inverse permutation via one scatter instead of a second argsort
    rows = jnp.arange(BH, dtype=jnp.int32)[:, None]
    undo_sort = jnp.zeros((BH, L), jnp.int32).at[rows, sticker].set(ticker)

    st = sticker % seqlen
    sqk = jnp.take_along_axis(qk, st[..., None], axis=1)           # bf16
    sv = jnp.take_along_axis(v, st[..., None], axis=1)             # bf16

    NC = n_hashes * n_buckets       # number of hash-sorted chunks
    cs = bucket_size                # chunk (bucket) size
    scale = dh ** -0.5

    # fold the 1/sqrt(dh) scale into q here (fused by XLA with the gather)
    bq = (sqk.astype(jnp.float32) * scale).astype(jnp.bfloat16).reshape(BH, NC, cs, dh)
    bk = _l2_normalize(sqk.astype(jnp.float32)).astype(jnp.bfloat16).reshape(BH, NC, cs, dh)
    bv = sv.astype(jnp.bfloat16).reshape(BH, NC, cs, dh)
    positions = st.reshape(BH, NC, 1, cs)

    # Look-one-back neighbours materialized once in HBM (chunk c-1 with
    # wraparound) so the kernel avoids all in-VMEM concat/slice copies.
    bkp = jnp.roll(bk, shift=1, axis=1)
    bvp = jnp.roll(bv, shift=1, axis=1)
    positions_prev = jnp.roll(positions, shift=1, axis=1)

    # ---- hot path: bucketed attention in the Pallas kernel ----
    bo, lse = chunk_attention_pallas(bq, bk, bv, bkp, bvp, positions, positions_prev)

    so = bo.reshape(BH, L, dh).astype(jnp.float32)
    slogits = lse.reshape(BH, L)

    o = jnp.take_along_axis(so, undo_sort[..., None], axis=1)
    logits = jnp.take_along_axis(slogits, undo_sort, axis=1)

    o = o.reshape(BH, n_hashes, seqlen, dh)
    logits = logits.reshape(BH, n_hashes, seqlen, 1)
    probs = jnp.exp(logits - jax.nn.logsumexp(logits, axis=1, keepdims=True))
    return jnp.sum(o * probs, axis=1)                              # (BH, T, dh) f32


def lsh_self_attention(x, params, *, heads, bucket_size, n_hashes, rot_key):
    B, T, C = x.shape
    dh = C // heads
    dim_heads = dh * heads

    # fused qk/v projection: read x from HBM once instead of twice
    w_qkv = jnp.concatenate([params['w_qk'], params['w_v']], axis=1)  # (C, 2*dim_heads)
    qkv = linear_pallas(x.reshape(B * T, C), w_qkv)                   # bf16
    qk = qkv[:, :dim_heads].reshape(B, T, dim_heads)
    v = qkv[:, dim_heads:].reshape(B, T, dim_heads)

    def merge_heads(t):
        return t.reshape(B, T, heads, dh).transpose(0, 2, 1, 3).reshape(B * heads, T, dh)

    out = lsh_attention(merge_heads(qk), merge_heads(v),
                        bucket_size=bucket_size, n_hashes=n_hashes, rot_key=rot_key)

    out = out.reshape(B, heads, T, dh).transpose(0, 2, 1, 3).reshape(B, T, dim_heads)
    out = linear_pallas(out.reshape(B * T, dim_heads), params['w_out'],
                        params['b_out'], out_dtype=jnp.float32).reshape(B, T, C)
    # post_attn_dropout / lsh dropout: eval mode -> identity
    return out


def reformer_layer_forward(queries, keys, values, attn_mask, tau, delta, *,
                           params, heads, bucket_size, n_hashes, rot_key):
    """Mirror of ReformerLayer.forward: pad to a multiple of 2*bucket_size, run
    LSH self-attention on queries only, slice back to the original length.
    (attn_mask / keys / values are ignored, exactly like the PyTorch module.)"""
    B, N, C = queries.shape
    m = bucket_size * 2
    if N % m != 0:
        fill_len = m - N % m
        queries = jnp.concatenate(
            [queries, jnp.zeros((B, fill_len, C), queries.dtype)], axis=1)
    out = lsh_self_attention(queries, params, heads=heads, bucket_size=bucket_size,
                             n_hashes=n_hashes, rot_key=rot_key)
    return out[:, :N, :], None


# ---------------------------------------------------------------------------
# Demo
# ---------------------------------------------------------------------------

if __name__ == "__main__":
    B, N, d_model, n_heads = 2, 10, 32, 4
    bucket_size, n_hashes = 4, 4

    key = jax.random.PRNGKey(0)
    k_x, k_qk, k_v, k_o, k_b, k_rot = jax.random.split(key, 6)

    queries = jax.random.normal(k_x, (B, N, d_model), jnp.float32)

    dh = d_model // n_heads
    dim_heads = dh * n_heads
    params = {
        # to_qk / to_v: Linear(dim, dim_heads, bias=False); to_out: Linear(dim_heads, dim)
        'w_qk': 0.1 * jax.random.normal(k_qk, (d_model, dim_heads), jnp.float32),
        'w_v': 0.1 * jax.random.normal(k_v, (d_model, dim_heads), jnp.float32),
        'w_out': 0.1 * jax.random.normal(k_o, (dim_heads, d_model), jnp.float32),
        'b_out': 0.1 * jax.random.normal(k_b, (d_model,), jnp.float32),
    }

    out, attn = reformer_layer_forward(
        queries, None, None, None, None, None,
        params=params, heads=n_heads, bucket_size=bucket_size,
        n_hashes=n_hashes, rot_key=k_rot)

    out = jax.block_until_ready(out)
    assert out.shape == (B, N, d_model), out.shape
    assert attn is None
    assert bool(jnp.all(jnp.isfinite(out)))
    print("KERNEL_OK")
</pallas_src>

<mosaic_0001>
module attributes {stable_mosaic.version = 11 : i64} {
  func.func @_linear_kernel(%arg0: i32, %arg1: i32, %arg2: memref<32x32xbf16, #tpu.memory_space<vmem>>, %arg3: memref<32x128xbf16, #tpu.memory_space<vmem>>, %arg4: memref<1x128xf32, #tpu.memory_space<vmem>>, %arg5: memref<32x128xbf16, #tpu.memory_space<vmem>>) attributes {dimension_semantics = [#tpu.dimension_semantics<parallel>, #tpu.dimension_semantics<arbitrary>], iteration_bounds = array<i64: 1, 1>, scalar_prefetch = 0 : i64, scratch_operands = 0 : i64, tpu.core_type = #tpu.core_type<tc>, window_params = [{transform_indices = @transform_0, window_bounds = array<i64: 32, 32>}, {transform_indices = @transform_1, window_bounds = array<i64: 32, 128>}, {transform_indices = @transform_2, window_bounds = array<i64: 1, 128>}, {transform_indices = @transform_3, window_bounds = array<i64: 32, 128>}]} {
    %c0 = arith.constant 0 : index
    %c0_0 = arith.constant 0 : index
    %0 = vector.load %arg2[%c0, %c0_0] : memref<32x32xbf16, #tpu.memory_space<vmem>>, vector<32x32xbf16>
    %c0_1 = arith.constant 0 : index
    %c0_2 = arith.constant 0 : index
    %1 = vector.load %arg3[%c0_1, %c0_2] : memref<32x128xbf16, #tpu.memory_space<vmem>>, vector<32x128xbf16>
    %cst = arith.constant dense<0.000000e+00> : vector<32x128xf32>
    %2 = tpu.matmul %0, %1, %cst {dimension_numbers = #tpu.dot_dimension_numbers<[1], [0], [0], [1], [0, 0, 1, 1], [], []>} : vector<32x32xbf16>, vector<32x128xbf16>, vector<32x128xf32> -> vector<32x128xf32>
    %c0_3 = arith.constant 0 : index
    %c0_4 = arith.constant 0 : index
    %3 = vector.load %arg4[%c0_3, %c0_4] : memref<1x128xf32, #tpu.memory_space<vmem>>, vector<1x128xf32>
    %4 = vector.broadcast %3 : vector<1x128xf32> to vector<32x128xf32>
    %5 = arith.addf %2, %4 : vector<32x128xf32>
    %6 = arith.truncf %5 : vector<32x128xf32> to vector<32x128xbf16>
    %c0_5 = arith.constant 0 : index
    %c0_6 = arith.constant 0 : index
    %7 = vector.load %arg5[%c0_5, %c0_6] : memref<32x128xbf16, #tpu.memory_space<vmem>>, vector<32x128xbf16>
    tpu.vector_store %arg5[%c0_5, %c0_6], %6 {strides = array<i32>} : memref<32x128xbf16, #tpu.memory_space<vmem>>, vector<32x128xbf16>,
    return
  }
  func.func @transform_0(%arg0: i32, %arg1: i32) -> (i32, i32) {
    %c0_i32 = arith.constant 0 : i32
    %c0_i32_0 = arith.constant 0 : i32
    return %arg1, %c0_i32 : i32, i32
  }
  func.func @transform_1(%arg0: i32, %arg1: i32) -> (i32, i32) {
    %c0_i32 = arith.constant 0 : i32
    %c0_i32_0 = arith.constant 0 : i32
    return %c0_i32, %arg0 : i32, i32
  }
  func.func @transform_2(%arg0: i32, %arg1: i32) -> (i32, i32) {
    %c0_i32 = arith.constant 0 : i32
    %c0_i32_0 = arith.constant 0 : i32
    return %c0_i32, %arg0 : i32, i32
  }
  func.func @transform_3(%arg0: i32, %arg1: i32) -> (i32, i32) {
    %c0_i32 = arith.constant 0 : i32
    return %arg1, %arg0 : i32, i32
  }
}

</mosaic_0001>

<llo_original>
// kernel: tpu_custom_call.1
$region0: #{tpu_custom_call.1}
  #allocation0 [shape = 'u32[]', space=smem, size = 0x4, offset = 0x4, fixed_abs, tag = 'smem constant byte address 0x4 - core index']
  #allocation1 [shape = 'u32[72,128]{1,0:T(1,128)}', space=vmem, size = 0x9000, scoped, tag = 'internal scratch']
  %s0 = inlined_call_operand.hbm [shape: bf16[32,32], index: 0, kind: input, shape index: {}]
  %s1 = inlined_call_operand.hbm [shape: bf16[32,128], index: 1, kind: input, shape index: {}]
  %s2 = inlined_call_operand.vmem [shape: f32[1,128], index: 2, kind: input, shape index: {}]
  %s3 = inlined_call_operand.hbm [shape: bf16[32,128], index: 3, kind: output, shape index: {}]
  %s4 = sld [smem:[#allocation0]]
  $region30: #{tpu_custom_call.1} parent=0
    _
  %s6 = ssub.s32 1, %s4
  %s7 = scalar_select 0, %s6, %s4
  $region1: #{tpu_custom_call.1} parent=0
    #allocation2 [shape = 'u8[8192]{0}', space=vmem, size = 0x2000, scoped, tag = 'input window, operand 0, single buffered']
    #allocation3 [shape = 's32[1]{0}', space=sflag, size = 0x4, scoped, tag = 'scoped memory for tpu_custom_call.1']
    #allocation4 [shape = 's32[1]{0}', space=sflag, size = 0x4, scoped, tag = 'scoped memory for tpu_custom_call.1']
    #allocation5 [shape = 'u8[8192]{0}', space=vmem, size = 0x2000, scoped, tag = 'input window, operand 1, single buffered']
    #allocation6 [shape = 's32[1]{0}', space=sflag, size = 0x4, scoped, tag = 'scoped memory for tpu_custom_call.1']
    #allocation7 [shape = 'u8[8192]{0}', space=vmem, size = 0x2000, scoped, tag = 'output window, operand 0, single buffered']
    %8 = vsyncpa [#allocation3], 0
    %9 = vsyncpa [#allocation6], 0
    %10 = vsyncpa [#allocation4], 0
    // Predicated region
    $region2: #{tpu_custom_call.1} parent=1 // pred_check
      _
    $region3: #{tpu_custom_call.1} parent=1 // pred_check_branch
      %12 = sbr.rel (0) target = $region5
    $region4: #{tpu_custom_call.1} parent=1 // pred_region
      %14 = vsyncadd [#allocation3], 0
      %s15 = sshll.u32 %s0, 4
      %s16 = int_to_ptr.hbm [resolvable:$true] %s15
      %s17 = sshll.u32 [#allocation2], 4
      %s18 = int_to_ptr.vmem [resolvable:$true] %s17
      %23 = dma.hbm_to_vmem [thread:$0]  %s16, 256, %s18, [#allocation3], 64, 64, 4
    $region5: #{tpu_custom_call.1} parent=1 // pred_fallthru
      _
    // Predicated region
    $region6: #{tpu_custom_call.1} parent=1 // pred_check
      _
    $region7: #{tpu_custom_call.1} parent=1 // pred_check_branch
      %25 = sbr.rel (0) target = $region9
    $region8: #{tpu_custom_call.1} parent=1 // pred_region
      %27 = vsyncadd [#allocation6], 0
      %s28 = sshll.u32 %s1, 4
      %s29 = int_to_ptr.hbm [resolvable:$true] %s28
      %s30 = sshll.u32 [#allocation5], 4
      %s31 = int_to_ptr.vmem [resolvable:$true] %s30
      %36 = dma.hbm_to_vmem [thread:$0]  %s29, 256, %s31, [#allocation6], 64, 64, 4
    $region9: #{tpu_custom_call.1} parent=1 // pred_fallthru
      _
    // Predicated region
    $region10: #{tpu_custom_call.1} parent=1 // pred_check
      _
    $region11: #{tpu_custom_call.1} parent=1 // pred_check_branch
      %38 = sbr.rel (0) target = $region13
    $region12: #{tpu_custom_call.1} parent=1 // pred_region
      _
    $region13: #{tpu_custom_call.1} parent=1 // pred_fallthru
      _
    // Predicated region
    $region14: #{tpu_custom_call.1} parent=1 // pred_check
      _
    $region15: #{tpu_custom_call.1} parent=1 // pred_check_branch
      %40 = sbr.rel (0) target = $region17
    $region16: #{tpu_custom_call.1} parent=1 // pred_region
      %42 = dma.done [#allocation3], 256
    $region17: #{tpu_custom_call.1} parent=1 // pred_fallthru
      _
    // Predicated region
    $region18: #{tpu_custom_call.1} parent=1 // pred_check
      _
    $region19: #{tpu_custom_call.1} parent=1 // pred_check_branch
      %44 = sbr.rel (0) target = $region21
    $region20: #{tpu_custom_call.1} parent=1 // pred_region
      %46 = dma.done [#allocation6], 256
    $region21: #{tpu_custom_call.1} parent=1 // pred_fallthru
      _
    %v48 = vld [vmem:[#allocation2] sm:$0xf]
    %v49 = vld [vmem:[#allocation2 + $0x4] sm:$0xf]
    %v50 = vld [vmem:[#allocation2 + $0x8] sm:$0xf]
    %v51 = vld [vmem:[#allocation2 + $0xc] sm:$0xf]
    %v52 = vld [vmem:[#allocation5] sm:$0xf]
    %v53 = vld [vmem:[#allocation5 + $0x4] sm:$0xf]
    %v54 = vld [vmem:[#allocation5 + $0x8] sm:$0xf]
    %v55 = vld [vmem:[#allocation5 + $0xc] sm:$0xf]
    %v56 = vld [vmem:[%s2] sm:$0x1]
    %v58 = vperm.slane %v56, 0
    %v64 = vunpack.c.l.b16 %v48
    %v65 = vunpack.c.l.b16 %v49
    %v66 = vunpack.c.l.b16 %v50
    %v67 = vunpack.c.l.b16 %v51
    %v68 = vpack.c.b16 %v65, %v64
    %v69 = vpack.c.b16 %v67, %v66
    %v74 = vunpack.c.l.b16 %v52
    %v75 = vunpack.c.l.b16 %v53
    %v76 = vunpack.c.l.b16 %v54
    %v77 = vunpack.c.l.b16 %v55
    %v78 = vpack.c.b16 %v75, %v74
    %v79 = vpack.c.b16 %v77, %v76
    %vm82 = vcmask 261120
    %v84 = vsel %vm82, %v68, 0
    %v87 = vsel %vm82, %v69, 0
    %89 = vmatpush.bf16.msra.mxu0 0
    %90 = vmatpush.bf16.msra.mxu0 0
    %91 = vmatpush.bf16.msra.mxu0 0
    %92 = vmatpush.bf16.msra.mxu0 0
    %93 = vmatpush.bf16.msra.mxu0 0
    %94 = vmatpush.bf16.msra.mxu0 0
    %95 = vmatpush.bf16.msra.mxu0 %v79
    %96 = vmatpush.bf16.msra.mxu0 %v78
    %97 = vmatmul.bf16.gmra.mxu0 %v84
    %v98 = vpop.f32.mrf.mxu0
    %v99 = vadd.f32 %v58, %v98
    %v100 = vpop.f32.mrf.mxu0
    %v101 = vadd.f32 %v58, %v100
    %102 = vmatmul.bf16.gmra.mxu0 %v87
    %v103 = vpop.f32.mrf.mxu0
    %v104 = vadd.f32 %v58, %v103
    %v105 = vpop.f32.mrf.mxu0
    %v106 = vadd.f32 %v58, %v105
    %107 = vdwg.mxu0
    %v108 = vpack.c.bf16 %v99, %v99
    %v109 = vpack.c.bf16 %v101, %v101
    %v110 = vpack.c.bf16 %v104, %v104
    %v111 = vpack.c.bf16 %v106, %v106
    %112 = vst [vmem:[#allocation7] sm:$0xf] %v108
    %113 = vst [vmem:[#allocation7 + $0x4] sm:$0xf] %v109
    %114 = vst [vmem:[#allocation7 + $0x8] sm:$0xf] %v110
    %115 = vst [vmem:[#allocation7 + $0xc] sm:$0xf] %v111
    // Predicated region
    $region22: #{tpu_custom_call.1} parent=1 // pred_check
      _
    $region23: #{tpu_custom_call.1} parent=1 // pred_check_branch
      %117 = sbr.rel (0) target = $region25
    $region24: #{tpu_custom_call.1} parent=1 // pred_region
      %119 = vsyncadd [#allocation4], 0
      %s120 = sshll.u32 [#allocation7], 4
      %s121 = int_to_ptr.vmem [resolvable:$true] %s120
      %s122 = sshll.u32 %s3, 4
      %s123 = int_to_ptr.hbm [resolvable:$true] %s122
      %128 = dma.vmem_to_hbm [thread:$0]  %s121, 256, %s123, [#allocation4], 64, 64, 4
    $region25: #{tpu_custom_call.1} parent=1 // pred_fallthru
      _
    // Predicated region
    $region26: #{tpu_custom_call.1} parent=1 // pred_check
      _
    $region27: #{tpu_custom_call.1} parent=1 // pred_check_branch
      %130 = sbr.rel (0) target = $region29
    $region28: #{tpu_custom_call.1} parent=1 // pred_region
      %132 = dma.done [#allocation4], 256
    $region29: #{tpu_custom_call.1} parent=1 // pred_fallthru
      _
    %133 = vsyncpa [#allocation3], 1
    %134 = vsyncpa [#allocation6], 1
    %135 = vsyncpa [#allocation4], 1

</llo_original>
